<compile_context>
chip_gen: v7x
topology: tpu7x:2x2x1
jax: 0.10.0
libtpu: 0.0.40
codegen_flags: <defaults>
</compile_context>

<pallas_src>
import functools

import jax
import jax.numpy as jnp
from jax import lax
from jax.experimental import pallas as pl
from jax.experimental.pallas import tpu as pltpu

LANES = 128            # vreg lane width
SUB_ROWS = 128         # in-kernel sub-chunk: 128x128 f32 = 64 KiB = 16 vregs
MAX_BLOCK_ROWS = 2048  # 2048x128 f32 = 1 MiB per buffer (x2 double-buffered)


def _bce_with_logits(x, target_label):
    """Numerically stable BCE-with-logits against a constant label t:
       max(x, 0) - x*t + log1p(exp(-|x|))"""
    x = x.astype(jnp.float32)
    return (jnp.maximum(x, 0.0) - x * target_label
            + jnp.log1p(jnp.exp(-jnp.abs(x))))


def _gan_loss_sum_kernel(x_ref, o_ref, *, target_label, block_rows, sub_rows,
                         rows_total, needs_row_mask):
    """Streams (block_rows, 128) tiles and folds them into an (8, 128)
    vreg-shaped accumulator (the VMEM-resident output block).

    Grid = (num_blocks,): a pure reduction axis ("arbitrary").  The single
    (8, 128) output block is zeroed at step 0 and revisited every step; the
    wrapper applies the 1/n mean scale.
    """
    j = pl.program_id(0)

    @pl.when(j == 0)
    def _():
        o_ref[...] = jnp.zeros_like(o_ref)

    nfull = block_rows // sub_rows
    rem = block_rows - nfull * sub_rows   # always a multiple of 8 (wrapper)

    acc = jnp.zeros((8, LANES), jnp.float32)

    if nfull > 0:
        if needs_row_mask:
            # Only the ragged final block has invalid (Pallas-padded) rows;
            # for every earlier block this compare is all-true.  The iota is
            # hoisted out of the loop; per sub-chunk it costs one scalar
            # subtract, one compare and one select.
            rows_left = rows_total - j * block_rows
            rid = lax.broadcasted_iota(jnp.int32, (sub_rows, LANES), 0)

        def body(i, acc):
            start = pl.multiple_of(i * sub_rows, sub_rows)
            loss = _bce_with_logits(x_ref[pl.ds(start, sub_rows), :],
                                    target_label)
            if needs_row_mask:
                loss = jnp.where(rid < rows_left - start, loss, 0.0)
            # fold into the (8,128) accumulator: pure VPU adds, no cross-lane
            # reduce on the hot path
            return acc + loss.reshape(sub_rows // 8, 8, LANES).sum(axis=0)

        acc = lax.fori_loop(0, nfull, body, acc, unroll=True)

    if rem > 0:
        # Only reached in the single-block regime (block_rows == rows_total),
        # where no row masking is ever required.
        start = nfull * sub_rows
        loss = _bce_with_logits(x_ref[pl.ds(start, rem), :], target_label)
        acc = acc + loss.reshape(rem // 8, 8, LANES).sum(axis=0)

    o_ref[...] += acc


def gan_loss(pred, target_is_real=True):
    """Mean BCE-with-logits of discriminator logits `pred` vs. a constant
    real/fake label (vanilla GAN loss).  `target_is_real` is a Python bool
    (baked in at trace time)."""
    label = 1.0 if target_is_real else 0.0
    x = pred.reshape(-1)
    n = x.shape[0]
    if n == 0:
        return jnp.float32(0.0)

    # The kernel consumes a lane-dense (rows, 128) view with rows a multiple
    # of 8.  Anything past that 8x128-aligned prefix (< 1024 elements) is a
    # tiny plain-jnp tail; when n is already aligned there is no copy at all.
    rows = (n // (8 * LANES)) * 8
    n_main = rows * LANES

    tail_sum = jnp.float32(0.0)
    if n_main < n:
        tail_sum = jnp.sum(_bce_with_logits(x[n_main:], label))
    if rows == 0:
        return tail_sum / n

    x_main = (x if n_main == n else x[:n_main]).reshape(rows, LANES)

    if rows <= MAX_BLOCK_ROWS:
        block_rows = rows            # single full-extent block
        num_blocks = 1
        needs_row_mask = False
    else:
        block_rows = MAX_BLOCK_ROWS
        num_blocks = pl.cdiv(rows, block_rows)
        needs_row_mask = (rows % block_rows) != 0   # ragged final block only

    kernel = functools.partial(
        _gan_loss_sum_kernel,
        target_label=label,
        block_rows=block_rows,
        sub_rows=SUB_ROWS,
        rows_total=rows,
        needs_row_mask=needs_row_mask,
    )

    partial_sums = pl.pallas_call(
        kernel,
        out_shape=jax.ShapeDtypeStruct((8, LANES), jnp.float32),
        grid_spec=pltpu.PrefetchScalarGridSpec(
            num_scalar_prefetch=0,
            grid=(num_blocks,),
            in_specs=[pl.BlockSpec((block_rows, LANES), lambda j: (j, 0))],
            out_specs=pl.BlockSpec((8, LANES), lambda j: (0, 0)),
        ),
        compiler_params=pltpu.CompilerParams(
            dimension_semantics=("arbitrary",)),
    )(x_main)

    return (jnp.sum(partial_sums) + tail_sum) / n


if __name__ == "__main__":
    key = jax.random.PRNGKey(0)

    def ref(p, lbl):
        p = p.astype(jnp.float32)
        return jnp.mean(jnp.maximum(p, 0.0) - p * lbl
                        + jnp.log1p(jnp.exp(-jnp.abs(p))))

    # primary small NCHW discriminator-logit shape (lane/row aligned, no copy)
    pred = jax.random.normal(key, (2, 4, 16, 16), dtype=jnp.float32)
    loss_real = gan_loss(pred, target_is_real=True)
    loss_fake = gan_loss(pred, target_is_real=False)
    jax.block_until_ready((loss_real, loss_fake))
    assert jnp.allclose(loss_real, ref(pred, 1.0), atol=1e-5, rtol=1e-5), (
        float(loss_real), float(ref(pred, 1.0)))
    assert jnp.allclose(loss_fake, ref(pred, 0.0), atol=1e-5, rtol=1e-5), (
        float(loss_fake), float(ref(pred, 0.0)))

    # unaligned patch-GAN style shape: exercises the plain-jnp tail path
    pred2 = jax.random.normal(jax.random.PRNGKey(1), (3, 1, 70, 70),
                              dtype=jnp.float32)
    l2 = gan_loss(pred2, target_is_real=False)
    assert jnp.allclose(l2, ref(pred2, 0.0), atol=1e-5, rtol=1e-5), (
        float(l2), float(ref(pred2, 0.0)))

    # mid-size aligned shape: exercises the unrolled sub-chunk loop, no mask
    pred3 = jax.random.normal(jax.random.PRNGKey(2), (4, 4, 64, 128),
                              dtype=jnp.float32)
    l3 = gan_loss(pred3, target_is_real=True)
    assert jnp.allclose(l3, ref(pred3, 1.0), atol=1e-5, rtol=1e-5), (
        float(l3), float(ref(pred3, 1.0)))

    # bf16 multi-block shape with a ragged final block: exercises the
    # pl.when-free, trace-time-gated row mask on the reduction tail
    pred4 = jax.random.normal(jax.random.PRNGKey(3), (1, 8, 200, 200),
                              dtype=jnp.bfloat16)
    l4 = gan_loss(pred4, target_is_real=True)
    assert jnp.allclose(l4, ref(pred4, 1.0), atol=1e-4, rtol=1e-4), (
        float(l4), float(ref(pred4, 1.0)))

    jax.block_until_ready((l2, l3, l4))
    print("KERNEL_OK")
</pallas_src>

<mosaic_0001>
module attributes {stable_mosaic.version = 11 : i64} {
  func.func @_gan_loss_sum_kernel(%arg0: i32, %arg1: memref<16x128xf32, #tpu.memory_space<vmem>>, %arg2: memref<8x128xf32, #tpu.memory_space<vmem>>) attributes {dimension_semantics = [#tpu.dimension_semantics<arbitrary>], iteration_bounds = array<i64: 1>, scalar_prefetch = 0 : i64, scratch_operands = 0 : i64, tpu.core_type = #tpu.core_type<tc>, window_params = [{transform_indices = @transform_0, window_bounds = array<i64: 16, 128>}, {pipeline_mode = #tpu.pipeline_mode<synchronous>, transform_indices = @transform_1, window_bounds = array<i64: 8, 128>}]} {
    %c0_i32 = arith.constant 0 : i32
    %0 = arith.cmpi eq, %arg0, %c0_i32 : i32
    %1 = arith.extui %0 : i1 to i32
    %c0_i32_0 = arith.constant 0 : i32
    %2 = arith.cmpi ne, %1, %c0_i32_0 : i32
    scf.if %2 {
      %cst_10 = arith.constant 0.000000e+00 : f32
      %22 = vector.broadcast %cst_10 : f32 to vector<8x128xf32>
      %c0_11 = arith.constant 0 : index
      %c0_12 = arith.constant 0 : index
      %23 = vector.load %arg2[%c0_11, %c0_12] : memref<8x128xf32, #tpu.memory_space<vmem>>, vector<8x128xf32>
      tpu.vector_store %arg2[%c0_11, %c0_12], %22 {strides = array<i32>} : memref<8x128xf32, #tpu.memory_space<vmem>>, vector<8x128xf32>,
    } else {
    }
    %cst = arith.constant 0.000000e+00 : f32
    %3 = vector.broadcast %cst : f32 to vector<8x128xf32>
    %c0 = arith.constant 0 : index
    %c0_1 = arith.constant 0 : index
    %4 = vector.load %arg1[%c0, %c0_1] : memref<16x128xf32, #tpu.memory_space<vmem>>, vector<16x128xf32>
    %cst_2 = arith.constant 0.000000e+00 : f32
    %5 = vector.broadcast %cst_2 : f32 to vector<16x128xf32>
    %6 = arith.maximumf %4, %5 : vector<16x128xf32>
    %cst_3 = arith.constant 1.000000e+00 : f32
    %7 = vector.broadcast %cst_3 : f32 to vector<16x128xf32>
    %8 = arith.mulf %4, %7 : vector<16x128xf32>
    %9 = arith.subf %6, %8 : vector<16x128xf32>
    %10 = math.absf %4 : vector<16x128xf32>
    %cst_4 = arith.constant 0.000000e+00 : f32
    %11 = vector.broadcast %cst_4 : f32 to vector<16x128xf32>
    %12 = arith.subf %11, %10 : vector<16x128xf32>
    %13 = math.exp %12 : vector<16x128xf32>
    %14 = math.log1p %13 : vector<16x128xf32>
    %15 = arith.addf %9, %14 : vector<16x128xf32>
    %16 = vector.shape_cast %15 : vector<16x128xf32> to vector<2x8x128xf32>
    %cst_5 = arith.constant dense<0.000000e+00> : vector<8x128xf32>
    %17 = vector.multi_reduction <add>, %16, %cst_5 [0] : vector<2x8x128xf32> to vector<8x128xf32>
    %18 = arith.addf %3, %17 : vector<8x128xf32>
    %c0_6 = arith.constant 0 : index
    %c0_7 = arith.constant 0 : index
    %19 = vector.load %arg2[%c0_6, %c0_7] : memref<8x128xf32, #tpu.memory_space<vmem>>, vector<8x128xf32>
    %20 = arith.addf %19, %18 : vector<8x128xf32>
    %c0_8 = arith.constant 0 : index
    %c0_9 = arith.constant 0 : index
    %21 = vector.load %arg2[%c0_8, %c0_9] : memref<8x128xf32, #tpu.memory_space<vmem>>, vector<8x128xf32>
    tpu.vector_store %arg2[%c0_8, %c0_9], %20 {strides = array<i32>} : memref<8x128xf32, #tpu.memory_space<vmem>>, vector<8x128xf32>,
    return
  }
  func.func @transform_0(%arg0: i32) -> (i32, i32) {
    %c0_i32 = arith.constant 0 : i32
    %c0_i32_0 = arith.constant 0 : i32
    return %arg0, %c0_i32 : i32, i32
  }
  func.func @transform_1(%arg0: i32) -> (i32, i32) {
    %c0_i32 = arith.constant 0 : i32
    %c0_i32_0 = arith.constant 0 : i32
    %c0_i32_1 = arith.constant 0 : i32
    return %c0_i32, %c0_i32_0 : i32, i32
  }
}

</mosaic_0001>

<llo_original>
// kernel: tpu_custom_call.1
$region0: #{tpu_custom_call.1}
  #allocation0 [shape = 'u32[]', space=smem, size = 0x4, offset = 0x4, fixed_abs, tag = 'smem constant byte address 0x4 - core index']
  #allocation1 [shape = 'u32[144,128]{1,0:T(1,128)}', space=vmem, size = 0x12000, scoped, tag = 'internal scratch']
  %s0 = inlined_call_operand.hbm [shape: f32[16,128], index: 0, kind: input, shape index: {}]
  %s1 = inlined_call_operand.hbm [shape: f32[8,128], index: 1, kind: output, shape index: {}]
  %s2 = sld [smem:[#allocation0]]
  $region22: #{tpu_custom_call.1} parent=0
    _
  %s4 = ssub.s32 1, %s2
  %s5 = scalar_select 0, %s4, %s2
  $region1: #{tpu_custom_call.1} parent=0
    #allocation2 [shape = 'u8[8192]{0}', space=vmem, size = 0x2000, scoped, tag = 'input window, operand 0, single buffered']
    #allocation3 [shape = 's32[1]{0}', space=sflag, size = 0x4, scoped, tag = 'scoped memory for tpu_custom_call.1']
    #allocation4 [shape = 's32[1]{0}', space=sflag, size = 0x4, scoped, tag = 'scoped memory for tpu_custom_call.1']
    #allocation5 [shape = 'u8[4096]{0}', space=vmem, size = 0x1000, scoped, tag = 'output window, operand 0, single buffered']
    %6 = vsyncpa [#allocation3], 0
    %7 = vsyncpa [#allocation4], 0
    // Predicated region
    $region2: #{tpu_custom_call.1} parent=1 // pred_check
      _
    $region3: #{tpu_custom_call.1} parent=1 // pred_check_branch
      %9 = sbr.rel (0) target = $region5
    $region4: #{tpu_custom_call.1} parent=1 // pred_region
      %s11 = ssub.s32 256, 256
      %12 = vsyncadd [#allocation3], %s11
      %s13 = sshll.u32 [#allocation2], 4
      %s14 = int_to_ptr.vmem [resolvable:$true] %s13
      %19 = dma.hbm_to_vmem [thread:$0]  %s0, 256, %s14, [#allocation3], 128, 128, 8
    $region5: #{tpu_custom_call.1} parent=1 // pred_fallthru
      _
    // Predicated region
    $region6: #{tpu_custom_call.1} parent=1 // pred_check
      _
    $region7: #{tpu_custom_call.1} parent=1 // pred_check_branch
      %21 = sbr.rel (0) target = $region9
    $region8: #{tpu_custom_call.1} parent=1 // pred_region
      %22 = dma.done [#allocation3], 256
    $region9: #{tpu_custom_call.1} parent=1 // pred_fallthru
      _
    %p23 = scmp.eq.s32.totalorder 0, 0
    // Predicated region
    $region10: #{tpu_custom_call.1} parent=1 // pred_check
      %p24 = pneg %p23
    $region11: #{tpu_custom_call.1} parent=1 // pred_check_branch
      %26 = sbr.rel (%p24) target = $region13
    $region12: #{tpu_custom_call.1} parent=1 // pred_region
      %27 = vst [vmem:[#allocation5] sm:$0xff] 0.0
    $region13: #{tpu_custom_call.1} parent=1 // pred_fallthru
      _
    %v28 = vld [vmem:[#allocation2] sm:$0xff]
    %v29 = vld [vmem:[#allocation2 + $0x8] sm:$0xff]
    %v30 = vmax.f32 %v28, 0.0
    %v31 = vmax.f32 %v29, 0.0
    %v32 = vsub.f32 %v30, %v28
    %v33 = vsub.f32 %v31, %v29
    %v34 = vand.u32 2147483647, %v28
    %v35 = vand.u32 2147483647, %v29
    %v36 = vsub.f32 0.0, %v34
    %v37 = vsub.f32 0.0, %v35
    %v38 = vmul.f32 %v36, 1.442695
    %v39 = vpow.pop %v38
    %v40 = vmul.f32 %v37, 1.442695
    %v41 = vpow.pop %v40
    %v42 = vadd.f32 %v39, 1.0
    %v43 = vlog2.pop %v42
    %v44 = vmul.f32 %v43, 0.6931472
    %v45 = vmul.f32 -0.5, %v39
    %v46 = vadd.f32 %v45, 1.0
    %v47 = vmul.f32 %v46, %v39
    %v48 = vand.u32 2147483647, %v39
    %vm49 = vcmp.lt.f32.partialorder %v48, 0.0004427343
    %v50 = vsel %vm49, %v47, %v44
    %v51 = vadd.f32 %v41, 1.0
    %v52 = vlog2.pop %v51
    %v53 = vmul.f32 %v52, 0.6931472
    %v54 = vmul.f32 -0.5, %v41
    %v55 = vadd.f32 %v54, 1.0
    %v56 = vmul.f32 %v55, %v41
    %v57 = vand.u32 2147483647, %v41
    %vm58 = vcmp.lt.f32.partialorder %v57, 0.0004427343
    %v59 = vsel %vm58, %v56, %v53
    %v60 = vadd.f32 %v32, %v50
    %v61 = vadd.f32 %v33, %v59
    %v62 = vadd.f32 %v60, %v61
    %v63 = vadd.f32 %v62, 0.0
    %v64 = vld [vmem:[#allocation5] sm:$0xff]
    %v65 = vadd.f32 %v64, %v63
    %66 = vst [vmem:[#allocation5] sm:$0xff] %v65
    // Predicated region
    $region14: #{tpu_custom_call.1} parent=1 // pred_check
      _
    $region15: #{tpu_custom_call.1} parent=1 // pred_check_branch
      %68 = sbr.rel (0) target = $region17
    $region16: #{tpu_custom_call.1} parent=1 // pred_region
      %s70 = ssub.s32 128, 128
      %71 = vsyncadd [#allocation4], %s70
      %s73 = sshll.u32 [#allocation5], 4
      %s74 = int_to_ptr.vmem [resolvable:$true] %s73
      %76 = dma.vmem_to_hbm [thread:$0]  %s74, 128, %s1, [#allocation4]
    $region17: #{tpu_custom_call.1} parent=1 // pred_fallthru
      _
    // Predicated region
    $region18: #{tpu_custom_call.1} parent=1 // pred_check
      _
    $region19: #{tpu_custom_call.1} parent=1 // pred_check_branch
      %78 = sbr.rel (0) target = $region21
    $region20: #{tpu_custom_call.1} parent=1 // pred_region
      %79 = dma.done [#allocation4], 128
    $region21: #{tpu_custom_call.1} parent=1 // pred_fallthru
      _
    %80 = vsyncpa [#allocation3], 1
    %81 = vsyncpa [#allocation4], 1

</llo_original>
